<compile_context>
chip_gen: v7x
topology: tpu7x:2x2x1
jax: 0.10.0
libtpu: 0.0.40
codegen_flags: <defaults>
</compile_context>

<pallas_src>
import jax
import jax.numpy as jnp
from jax.experimental import pallas as pl
from jax.experimental.pallas import tpu as pltpu


# ---------------------------------------------------------------------------
# Kernel: one (row-tile, vocab-tile) grid step of fused matmul + log_softmax
# ---------------------------------------------------------------------------
def _proj_logsoftmax_kernel(x_ref, w_ref, b_ref, out_ref, logits_ref):
    """
    x_ref:      (TM, D)   activation tile (f32 in HBM, cast to bf16 for the MXU)
    w_ref:      (D, TV)   weight tile (bf16), streamed along the vocab axis
    b_ref:      (1, TV)   bias tile (f32; padded vocab columns hold -1e30)
    out_ref:    (TM, Vp)  output block, resident across the vocab grid axis
    logits_ref: (TM, Vp)  f32 VMEM scratch holding this row tile's logits
    """
    j = pl.program_id(1)

    # MXU matmul: bf16 operands, f32 accumulation; bias add in f32.
    z = jnp.dot(x_ref[...].astype(jnp.bfloat16), w_ref[...],
                preferred_element_type=jnp.float32) + b_ref[...]

    tv = z.shape[-1]
    col = pl.multiple_of(j * tv, 128)          # lane-aligned dynamic offset
    logits_ref[:, pl.ds(col, tv)] = z

    # Finalize after the last vocab tile: numerically-stable log_softmax.
    @pl.when(j == pl.num_programs(1) - 1)
    def _():
        logits = logits_ref[...]                                   # (TM, Vp) f32
        m = jnp.max(logits, axis=-1, keepdims=True)
        shifted = logits - m
        lse = jnp.log(jnp.sum(jnp.exp(shifted), axis=-1, keepdims=True))
        out_ref[...] = (shifted - lse).astype(out_ref.dtype)


# ---------------------------------------------------------------------------
# Wrapper
# ---------------------------------------------------------------------------
def projection_log_softmax(x, w, b, *, tm=256, tv=2048):
    """x: (B, S, D); w: (D, V) (= PyTorch nn.Linear.weight.T); b: (1, V).

    Returns (B, S, V) log-probabilities in x.dtype.
    """
    B, S, D = x.shape
    V = w.shape[1]
    M = B * S

    xf = x.reshape(M, D)

    # --- vocab tiling: lane multiples of 128, pad V up to a multiple of TV ---
    v_pad = pl.cdiv(V, 128) * 128
    tv = max(128, min((tv // 128) * 128, v_pad))
    v_pad = pl.cdiv(v_pad, tv) * tv
    n_v = v_pad // tv

    # Parameter-side padding (done once): padded columns get a huge negative
    # bias so they never contribute to the max / logsumexp.
    if v_pad != V:
        w = jnp.pad(w, ((0, 0), (0, v_pad - V)))
        b = jnp.pad(b, ((0, 0), (0, v_pad - V)), constant_values=-1e30)
    w = w.astype(jnp.bfloat16)      # bf16 weights -> MXU peak + half the DMA bytes
    b = b.astype(jnp.float32)

    # --- row tiling: multiple of 16 (bf16 packing); no HBM pad of activations ---
    tm = max(16, (min(tm, M) // 16) * 16)
    n_m = pl.cdiv(M, tm)

    out_dtype = x.dtype
    out_itemsize = jnp.dtype(out_dtype).itemsize

    # VMEM estimate: double-buffered pipeline blocks + the logits scratch.
    vmem_need = (2 * tm * D * 4            # x tile (f32), 2 buffers
                 + 2 * D * tv * 2          # w tile (bf16), 2 buffers
                 + 2 * tv * 4              # bias tile
                 + 2 * tm * v_pad * out_itemsize   # output block, 2 buffers
                 + tm * v_pad * 4)         # logits scratch
    vmem_limit = int(vmem_need * 1.5) if vmem_need * 1.5 > (32 << 20) else None

    cost = pl.CostEstimate(
        flops=2 * M * D * v_pad,
        transcendentals=M * v_pad,
        bytes_accessed=(M * D * jnp.dtype(x.dtype).itemsize
                        + D * v_pad * 2 + v_pad * 4
                        + M * v_pad * out_itemsize),
    )

    out = pl.pallas_call(
        _proj_logsoftmax_kernel,
        out_shape=jax.ShapeDtypeStruct((M, v_pad), out_dtype),
        grid=(n_m, n_v),
        in_specs=[
            pl.BlockSpec((tm, D), lambda i, j: (i, 0)),   # activations: resident over vocab axis
            pl.BlockSpec((D, tv), lambda i, j: (0, j)),   # weight: streamed by vocab tile
            pl.BlockSpec((1, tv), lambda i, j: (0, j)),   # bias tile
        ],
        out_specs=pl.BlockSpec((tm, v_pad), lambda i, j: (i, 0)),  # lane-dense output block
        scratch_shapes=[pltpu.VMEM((tm, v_pad), jnp.float32)],
        compiler_params=pltpu.CompilerParams(
            dimension_semantics=("parallel", "arbitrary"),
            vmem_limit_bytes=vmem_limit),
        cost_estimate=cost,
    )(xf, w, b)

    return out[:, :V].reshape(B, S, V)


# ---------------------------------------------------------------------------
# Pure-JAX reference (mirrors the PyTorch semantics) for validation
# ---------------------------------------------------------------------------
def _ref_projection_log_softmax(x, w, b):
    z = x @ w + b[0]
    return jax.nn.log_softmax(z, axis=-1)


# ---------------------------------------------------------------------------
# Demo / self-test
# ---------------------------------------------------------------------------
if __name__ == "__main__":
    B, S, D, V = 2, 16, 32, 200   # batch, seq, d_model, vocab_size (V not a lane multiple)

    root = jax.random.PRNGKey(0)
    kx, kw, kb = jax.random.split(root, 3)

    x = jax.random.normal(kx, (B, S, D), jnp.float32)
    # Weight stored as (d_model, vocab) = transpose of PyTorch nn.Linear.weight.
    w = 0.05 * jax.random.normal(kw, (D, V), jnp.float32)
    b = 0.05 * jax.random.normal(kb, (1, V), jnp.float32)

    # tm=16 / tv=128 -> grid (2, 2): exercises row tiling, vocab tiling, and the
    # padded-vocab masking (V=200 -> Vp=256).
    out = projection_log_softmax(x, w, b, tm=16, tv=128)
    out = jax.block_until_ready(out)

    ref = _ref_projection_log_softmax(x, w, b)
    assert out.shape == (B, S, V)
    # bf16 matmul operands (f32 accumulation + f32 softmax math) vs f32 reference.
    assert jnp.allclose(out, ref, atol=1e-2, rtol=1e-2), (
        "Pallas output mismatch vs JAX reference")
    # Sanity: rows are valid log-probability distributions.
    assert jnp.allclose(jnp.sum(jnp.exp(out), axis=-1), 1.0, atol=1e-3)

    print("KERNEL_OK")
</pallas_src>

<mosaic_0001>
module attributes {stable_mosaic.version = 11 : i64} {
  func.func @_proj_logsoftmax_kernel(%arg0: i32, %arg1: i32, %arg2: memref<16x32xf32, #tpu.memory_space<vmem>>, %arg3: memref<32x128xbf16, #tpu.memory_space<vmem>>, %arg4: memref<1x128xf32, #tpu.memory_space<vmem>>, %arg5: memref<16x256xf32, #tpu.memory_space<vmem>>, %arg6: memref<16x256xf32, #tpu.memory_space<vmem>>) attributes {dimension_semantics = [#tpu.dimension_semantics<parallel>, #tpu.dimension_semantics<arbitrary>], iteration_bounds = array<i64: 2, 2>, scalar_prefetch = 0 : i64, scratch_operands = 1 : i64, tpu.core_type = #tpu.core_type<tc>, window_params = [{transform_indices = @transform_0, window_bounds = array<i64: 16, 32>}, {transform_indices = @transform_1, window_bounds = array<i64: 32, 128>}, {transform_indices = @transform_2, window_bounds = array<i64: 1, 128>}, {transform_indices = @transform_3, window_bounds = array<i64: 16, 256>}]} {
    %c0 = arith.constant 0 : index
    %c0_0 = arith.constant 0 : index
    %0 = vector.load %arg2[%c0, %c0_0] : memref<16x32xf32, #tpu.memory_space<vmem>>, vector<16x32xf32>
    %1 = arith.truncf %0 : vector<16x32xf32> to vector<16x32xbf16>
    %c0_1 = arith.constant 0 : index
    %c0_2 = arith.constant 0 : index
    %2 = vector.load %arg3[%c0_1, %c0_2] : memref<32x128xbf16, #tpu.memory_space<vmem>>, vector<32x128xbf16>
    %cst = arith.constant dense<0.000000e+00> : vector<16x128xf32>
    %3 = tpu.matmul %1, %2, %cst {dimension_numbers = #tpu.dot_dimension_numbers<[1], [0], [0], [1], [0, 0, 1, 1], [], []>} : vector<16x32xbf16>, vector<32x128xbf16>, vector<16x128xf32> -> vector<16x128xf32>
    %c0_3 = arith.constant 0 : index
    %c0_4 = arith.constant 0 : index
    %4 = vector.load %arg4[%c0_3, %c0_4] : memref<1x128xf32, #tpu.memory_space<vmem>>, vector<1x128xf32>
    %5 = vector.broadcast %4 : vector<1x128xf32> to vector<16x128xf32>
    %6 = arith.addf %3, %5 : vector<16x128xf32>
    %c128_i32 = arith.constant 128 : i32
    %7 = arith.muli %arg1, %c128_i32 : i32
    %8 = tpu.assume_multiple %7, 128 : i32
    %c0_5 = arith.constant 0 : index
    %9 = arith.index_cast %8 : i32 to index
    %10 = vector.load %arg6[%c0_5, %9] : memref<16x256xf32, #tpu.memory_space<vmem>>, vector<16x128xf32>
    tpu.vector_store %arg6[%c0_5, %9], %6 {strides = array<i32>} : memref<16x256xf32, #tpu.memory_space<vmem>>, vector<16x128xf32>,
    %c1_i32 = arith.constant 1 : i32
    %11 = arith.cmpi eq, %arg1, %c1_i32 : i32
    %12 = arith.extui %11 : i1 to i32
    %c0_i32 = arith.constant 0 : i32
    %13 = arith.cmpi ne, %12, %c0_i32 : i32
    scf.if %13 {
      %c0_6 = arith.constant 0 : index
      %c0_7 = arith.constant 0 : index
      %14 = vector.load %arg6[%c0_6, %c0_7] : memref<16x256xf32, #tpu.memory_space<vmem>>, vector<16x256xf32>
      %cst_8 = arith.constant dense<0xFF800000> : vector<16xf32>
      %15 = vector.multi_reduction <maximumf>, %14, %cst_8 [1] : vector<16x256xf32> to vector<16xf32>
      %16 = vector.shape_cast %15 : vector<16xf32> to vector<16x1xf32>
      %17 = vector.broadcast %16 : vector<16x1xf32> to vector<16x256xf32>
      %18 = arith.subf %14, %17 : vector<16x256xf32>
      %19 = math.exp %18 : vector<16x256xf32>
      %cst_9 = arith.constant dense<0.000000e+00> : vector<16xf32>
      %20 = vector.multi_reduction <add>, %19, %cst_9 [1] : vector<16x256xf32> to vector<16xf32>
      %21 = vector.shape_cast %20 : vector<16xf32> to vector<16x1xf32>
      %22 = math.log %21 : vector<16x1xf32>
      %23 = vector.broadcast %22 : vector<16x1xf32> to vector<16x256xf32>
      %24 = arith.subf %18, %23 : vector<16x256xf32>
      %c0_10 = arith.constant 0 : index
      %c0_11 = arith.constant 0 : index
      %25 = vector.load %arg5[%c0_10, %c0_11] : memref<16x256xf32, #tpu.memory_space<vmem>>, vector<16x256xf32>
      tpu.vector_store %arg5[%c0_10, %c0_11], %24 {strides = array<i32>} : memref<16x256xf32, #tpu.memory_space<vmem>>, vector<16x256xf32>,
    } else {
    }
    return
  }
  func.func @transform_0(%arg0: i32, %arg1: i32) -> (i32, i32) {
    %c0_i32 = arith.constant 0 : i32
    %c0_i32_0 = arith.constant 0 : i32
    return %arg0, %c0_i32 : i32, i32
  }
  func.func @transform_1(%arg0: i32, %arg1: i32) -> (i32, i32) {
    %c0_i32 = arith.constant 0 : i32
    %c0_i32_0 = arith.constant 0 : i32
    return %c0_i32, %arg1 : i32, i32
  }
  func.func @transform_2(%arg0: i32, %arg1: i32) -> (i32, i32) {
    %c0_i32 = arith.constant 0 : i32
    %c0_i32_0 = arith.constant 0 : i32
    return %c0_i32, %arg1 : i32, i32
  }
  func.func @transform_3(%arg0: i32, %arg1: i32) -> (i32, i32) {
    %c0_i32 = arith.constant 0 : i32
    %c0_i32_0 = arith.constant 0 : i32
    return %arg0, %c0_i32 : i32, i32
  }
}

</mosaic_0001>

<llo_original>
// kernel: tpu_custom_call.1
$region0: #{tpu_custom_call.1}
  #allocation0 [shape = 'u32[]', space=smem, size = 0x4, offset = 0x4, fixed_abs, tag = 'smem constant byte address 0x4 - core index']
  #allocation1 [shape = 'u32[144,128]{1,0:T(1,128)}', space=vmem, size = 0x12000, scoped, tag = 'internal scratch']
  #allocation2 [shape = 'f32[16,256]{1,0:T(8,128)}', space=vmem, size = 0x4000, scoped, tag = 'scratch operand']
  %s0 = inlined_call_operand.hbm [shape: f32[32,32], index: 0, kind: input, shape index: {}]
  %s1 = inlined_call_operand.hbm [shape: bf16[32,256], index: 1, kind: input, shape index: {}]
  %s2 = inlined_call_operand.vmem [shape: f32[1,256], index: 2, kind: input, shape index: {}]
  %s3 = inlined_call_operand.hbm [shape: f32[32,256], index: 3, kind: output, shape index: {}]
  %s4 = sld [smem:[#allocation0]]
  $region57: #{tpu_custom_call.1} parent=0
    _
  %s6 = ssub.s32 1, %s4
  %s7 = scalar_select 0, %s6, %s4
  $region1: #{tpu_custom_call.1} parent=0
    #allocation3 [shape = 'u8[16384]{0}', space=vmem, size = 0x4000, scoped, tag = 'input window, operand 0']
    #allocation4 [shape = 's32[2]{0}', space=sflag, size = 0x8, scoped, tag = 'scoped memory for tpu_custom_call.1']
    #allocation5 [shape = 's32[2]{0}', space=sflag, size = 0x8, scoped, tag = 'scoped memory for tpu_custom_call.1']
    #allocation6 [shape = 'u8[16384]{0}', space=vmem, size = 0x4000, scoped, tag = 'input window, operand 1']
    #allocation7 [shape = 's32[2]{0}', space=sflag, size = 0x8, scoped, tag = 'scoped memory for tpu_custom_call.1']
    #allocation8 [shape = 'u8[32768]{0}', space=vmem, size = 0x8000, scoped, tag = 'output window, operand 0']
    %8 = vsyncpa [#allocation4], 0
    %s9 = scalar_lea.sflag [#allocation4], 1
    %10 = vsyncpa %s9, 0
    %11 = vsyncpa [#allocation7], 0
    %s12 = scalar_lea.sflag [#allocation7], 1
    %13 = vsyncpa %s12, 0
    %14 = vsyncpa [#allocation5], 0
    %s15 = scalar_lea.sflag [#allocation5], 1
    %16 = vsyncpa %s15, 0
    loop: start=0, step=1, limit=6
    $region2: #{tpu_custom_call.1} parent=1 // loop_pre_header
      _
    $region3: #{tpu_custom_call.1} parent=1 // loop_header
      %s18 = sphi 0, %s22
      %p19 = scmp.ge.s32.totalorder %s18, 6
      %s25 = sphi 0, %s37
      %s26 = sphi 0, %s33
      %s27 = sphi 0, %s25
      %s28 = sphi 0, %s26
      %s29 = sphi 0, %s27
      %s30 = sphi 0, %s28
      %s40 = sphi 0, %s42
      %s43 = sphi 0, %s40
      %s44 = sphi 0, %s43
      %s60 = sphi 0, %s44
      %s66 = sphi 0, %s68
      %s69 = sphi 0, %s66
      %s70 = sphi 0, %s69
      %s86 = sphi 0, %s70
      %s92 = sphi 0, %s94
      %s95 = sphi 0, %s92
      %s96 = sphi 0, %s95
      %s112 = sphi 0, %s96
      %s118 = sphi 0, %s120
      %s121 = sphi 0, %s118
      %s122 = sphi 0, %s121
      %s138 = sphi 0, %s122
    $region4: #{tpu_custom_call.1} parent=1 // loop_header_branch
      %21 = sbr.rel (%p19) target = $region8
    $region5: #{tpu_custom_call.1} parent=1 // loop_body
      %s23 = ssub.s32 %s18, 1
      %s24 = ssub.s32 %s18, 2
      %s31 = sadd.s32 1, %s26
      %p32 = scmp.ge.s32.totalorder %s31, 2
      %s33 = scalar_select %p32, 0, %s31
      %s34 = sadd.s32 1, %s25
      %s35 = scalar_select %p32, %s34, %s25
      %p36 = scmp.ge.s32.totalorder %s35, 2
      %s37 = scalar_select %p36, 0, %s35
      %s38 = ssub.s32 %s25, %s37
      %p39 = scmp.eq.s32.totalorder %s38, 0
      %s41 = sadd.s32 %s40, 1
      %s42 = scalar_select %p39, %s40, %s41
      %p45 = pneg %p39
      %p46 = scmp.eq.s32.totalorder %s18, 3
      %p47 = por %p45, %p46
      %p48 = scmp.ne.s32.totalorder %s40, %s43
      %p49 = scmp.eq.s32.totalorder %s18, 0
      %p50 = por %p48, %p49
      %p51 = scmp.ne.s32.totalorder %s40, %s43
      %p52 = scmp.eq.s32.totalorder %s23, 3
      %p53 = por %p51, %p52
      %p54 = scmp.ne.s32.totalorder %s43, %s44
      %p55 = scmp.eq.s32.totalorder %s23, 0
      %p56 = por %p54, %p55
      %p57 = scmp.ne.s32.totalorder %s43, %s44
      %p58 = scmp.eq.s32.totalorder %s24, 3
      %p59 = por %p57, %p58
      %p61 = scmp.ne.s32.totalorder %s44, %s60
      %p62 = scmp.eq.s32.totalorder %s24, 0
      %p63 = por %p61, %p62
      %s64 = ssub.s32 %s26, %s33
      %p65 = scmp.eq.s32.totalorder %s64, 0
      %s67 = sadd.s32 %s66, 1
      %s68 = scalar_select %p65, %s66, %s67
      %p71 = pneg %p65
      %p72 = scmp.eq.s32.totalorder %s18, 3
      %p73 = por %p71, %p72
      %p74 = scmp.ne.s32.totalorder %s66, %s69
      %p75 = scmp.eq.s32.totalorder %s18, 0
      %p76 = por %p74, %p75
      %p77 = scmp.ne.s32.totalorder %s66, %s69
      %p78 = scmp.eq.s32.totalorder %s23, 3
      %p79 = por %p77, %p78
      %p80 = scmp.ne.s32.totalorder %s69, %s70
      %p81 = scmp.eq.s32.totalorder %s23, 0
      %p82 = por %p80, %p81
      %p83 = scmp.ne.s32.totalorder %s69, %s70
      %p84 = scmp.eq.s32.totalorder %s24, 3
      %p85 = por %p83, %p84
      %p87 = scmp.ne.s32.totalorder %s70, %s86
      %p88 = scmp.eq.s32.totalorder %s24, 0
      %p89 = por %p87, %p88
      %s90 = ssub.s32 %s26, %s33
      %p91 = scmp.eq.s32.totalorder %s90, 0
      %s93 = sadd.s32 %s92, 1
      %s94 = scalar_select %p91, %s92, %s93
      %p97 = pneg %p91
      %p98 = scmp.eq.s32.totalorder %s18, 3
      %p99 = por %p97, %p98
      %p100 = scmp.ne.s32.totalorder %s92, %s95
      %p101 = scmp.eq.s32.totalorder %s18, 0
      %p102 = por %p100, %p101
      %p103 = scmp.ne.s32.totalorder %s92, %s95
      %p104 = scmp.eq.s32.totalorder %s23, 3
      %p105 = por %p103, %p104
      %p106 = scmp.ne.s32.totalorder %s95, %s96
      %p107 = scmp.eq.s32.totalorder %s23, 0
      %p108 = por %p106, %p107
      %p109 = scmp.ne.s32.totalorder %s95, %s96
      %p110 = scmp.eq.s32.totalorder %s24, 3
      %p111 = por %p109, %p110
      %p113 = scmp.ne.s32.totalorder %s96, %s112
      %p114 = scmp.eq.s32.totalorder %s24, 0
      %p115 = por %p113, %p114
      %s116 = ssub.s32 %s25, %s37
      %p117 = scmp.eq.s32.totalorder %s116, 0
      %s119 = sadd.s32 %s118, 1
      %s120 = scalar_select %p117, %s118, %s119
      %p123 = pneg %p117
      %p124 = scmp.eq.s32.totalorder %s18, 3
      %p125 = por %p123, %p124
      %p126 = scmp.ne.s32.totalorder %s118, %s121
      %p127 = scmp.eq.s32.totalorder %s18, 0
      %p128 = por %p126, %p127
      %p129 = scmp.ne.s32.totalorder %s118, %s121
      %p130 = scmp.eq.s32.totalorder %s23, 3
      %p131 = por %p129, %p130
      %p132 = scmp.ne.s32.totalorder %s121, %s122
      %p133 = scmp.eq.s32.totalorder %s23, 0
      %p134 = por %p132, %p133
      %p135 = scmp.ne.s32.totalorder %s121, %s122
      %p136 = scmp.eq.s32.totalorder %s24, 3
      %p137 = por %p135, %p136
      %p139 = scmp.ne.s32.totalorder %s122, %s138
      %p140 = scmp.eq.s32.totalorder %s24, 0
      %p141 = por %p139, %p140
      %p142 = scmp.le.s32.totalorder 1, %s18
      %p143 = scmp.lt.s32.totalorder %s18, 5
      %p144 = pnand %p142, %p143
      %p145 = pneg %p144
      // Predicated region
      $region9: #{tpu_custom_call.1} parent=5 // pred_check
        _
      $region10: #{tpu_custom_call.1} parent=5 // pred_check_branch
        %147 = sbr.rel (%p144) target = $region12
      $region11: #{tpu_custom_call.1} parent=5 // pred_region
        %s148 = ssub.s32 %s18, 1
      $region12: #{tpu_custom_call.1} parent=5 // pred_fallthru
        _
      %p149 = scmp.lt.s32.totalorder %s18, 4
      // Predicated region
      $region13: #{tpu_custom_call.1} parent=5 // pred_check
        %p150 = pneg %p149
      $region14: #{tpu_custom_call.1} parent=5 // pred_check_branch
        %152 = sbr.rel (%p150) target = $region16
      $region15: #{tpu_custom_call.1} parent=5 // pred_region
        // Predicated region
        $region17: #{tpu_custom_call.1} parent=15 // pred_check
          %p153 = pneg %p50
        $region18: #{tpu_custom_call.1} parent=15 // pred_check_branch
          %155 = sbr.rel (%p153) target = $region20
        $region19: #{tpu_custom_call.1} parent=15 // pred_region
          %s156 = sand.u32 %s40, 1
          %s157 = scalar_lea.sflag [#allocation4], %s156
          %s158 = sand.u32 %s40, 1
          %s159 = smul.addr %s158, 16
          %s160 = scalar_lea.vmem [#allocation3], %s159
          %s161 = smul.u32 2, %s25
          %s163 = ssub.s32 256, 256
          %164 = vsyncadd %s157, %s163
          %s165 = smul.addr %s161, 128
          %s166 = scalar_lea.hbm %s0, %s165
          %s167 = sshll.u32 %s160, 4
          %s168 = int_to_ptr.vmem [resolvable:$true] %s167
          %173 = dma.hbm_to_vmem [thread:$0]  %s166, 256, %s168, %s157, 128, 128, 8
        $region20: #{tpu_custom_call.1} parent=15 // pred_fallthru
          _
        // Predicated region
        $region21: #{tpu_custom_call.1} parent=15 // pred_check
          %p174 = pneg %p76
        $region22: #{tpu_custom_call.1} parent=15 // pred_check_branch
          %176 = sbr.rel (%p174) target = $region24
        $region23: #{tpu_custom_call.1} parent=15 // pred_region
          %s177 = sand.u32 %s66, 1
          %s178 = scalar_lea.sflag [#allocation7], %s177
          %s179 = sand.u32 %s66, 1
          %s180 = smul.addr %s179, 16
          %s181 = scalar_lea.vmem [#allocation6], %s180
          %s183 = ssub.s32 256, 256
          %184 = vsyncadd %s178, %s183
          %s185 = smul.addr %s26, 64
          %s186 = scalar_lea.hbm %s1, %s185
          %s187 = sshll.u32 %s181, 4
          %s188 = int_to_ptr.vmem [resolvable:$true] %s187
          %193 = dma.hbm_to_vmem [thread:$0]  %s186, 256, %s188, %s178, 128, 64, 4
        $region24: #{tpu_custom_call.1} parent=15 // pred_fallthru
          _
        // Predicated region
        $region25: #{tpu_custom_call.1} parent=15 // pred_check
          %p194 = pneg %p102
        $region26: #{tpu_custom_call.1} parent=15 // pred_check_branch
          %196 = sbr.rel (%p194) target = $region28
        $region27: #{tpu_custom_call.1} parent=15 // pred_region
          %p197 = scmp.lt.s32.totalorder %s26, 1
          %s198 = scalar_select %p197, %s26, 1
          %s199 = scalar_lea.vmem %s2, %s198
        $region28: #{tpu_custom_call.1} parent=15 // pred_fallthru
          _
      $region16: #{tpu_custom_call.1} parent=5 // pred_fallthru
        _
      %p200 = scmp.le.s32.totalorder 1, %s18
      %p201 = scmp.lt.s32.totalorder %s18, 5
      %p202 = pnand %p200, %p201
      %p203 = pneg %p202
      // Predicated region
      $region29: #{tpu_custom_call.1} parent=5 // pred_check
        _
      $region30: #{tpu_custom_call.1} parent=5 // pred_check_branch
        %205 = sbr.rel (%p202) target = $region32
      $region31: #{tpu_custom_call.1} parent=5 // pred_region
        %s206 = ssub.s32 %s18, 1
        %s207 = sand.u32 %s43, 1
        %s208 = scalar_lea.sflag [#allocation4], %s207
        %s209 = sand.u32 %s43, 1
        %s210 = smul.addr %s209, 16
        %s211 = scalar_lea.vmem [#allocation3], %s210
        // Predicated region
        $region33: #{tpu_custom_call.1} parent=31 // pred_check
          %p212 = pneg %p56
        $region34: #{tpu_custom_call.1} parent=31 // pred_check_branch
          %214 = sbr.rel (%p212) target = $region36
        $region35: #{tpu_custom_call.1} parent=31 // pred_region
          %215 = dma.done %s208, 256
        $region36: #{tpu_custom_call.1} parent=31 // pred_fallthru
          _
        %s216 = sand.u32 %s69, 1
        %s217 = scalar_lea.sflag [#allocation7], %s216
        %s218 = sand.u32 %s69, 1
        %s219 = smul.addr %s218, 16
        %s220 = scalar_lea.vmem [#allocation6], %s219
        // Predicated region
        $region37: #{tpu_custom_call.1} parent=31 // pred_check
          %p221 = pneg %p82
        $region38: #{tpu_custom_call.1} parent=31 // pred_check_branch
          %223 = sbr.rel (%p221) target = $region40
        $region39: #{tpu_custom_call.1} parent=31 // pred_region
          %224 = dma.done %s217, 256
        $region40: #{tpu_custom_call.1} parent=31 // pred_fallthru
          _
        %s225 = sand.u32 %s43, 1
        %s226 = scalar_lea.sflag [#allocation4], %s225
        %s227 = sand.u32 %s43, 1
        %s228 = smul.addr %s227, 16
        %s229 = scalar_lea.vmem [#allocation3], %s228
        %p230 = pneg %p56
        %p231 = pneg %p53
        %s232 = sand.u32 %s69, 1
        %s233 = scalar_lea.sflag [#allocation7], %s232
        %s234 = sand.u32 %s69, 1
        %s235 = smul.addr %s234, 16
        %s236 = scalar_lea.vmem [#allocation6], %s235
        %p237 = pneg %p82
        %p238 = pneg %p79
        %p239 = scmp.lt.s32.totalorder %s28, 1
        %s240 = scalar_select %p239, %s28, 1
        %s241 = scalar_lea.vmem %s2, %s240
        %p242 = pneg %p108
        %p243 = pneg %p105
        %p244 = pneg %p134
        %p245 = pneg %p131
        %s246 = sand.u32 %s121, 1
        %s247 = scalar_lea.sflag [#allocation5], %s246
        %s248 = sand.u32 %s121, 1
        %s249 = smul.addr %s248, 32
        %s250 = scalar_lea.vmem [#allocation8], %s249
        %s251 = smul.u32 2, %s27
        %p252 = scmp.lt.s32.totalorder %s28, 1
        %s253 = scalar_select %p252, %s28, 1
        %s254 = scalar_lea.vmem %s2, %s253
        %s255 = smul.u32 2, %s27
        %v257 = vld [vmem:[%s211] sm:$0xff]
        %v258 = vld [vmem:[%s211 + $0x8] sm:$0xff]
        %v259 = vpack.c.bf16 %v258, %v257
        %v260 = vld [vmem:[%s220] sm:$0xf]
        %v261 = vld [vmem:[%s220 + $0x4] sm:$0xf]
        %v262 = vld [vmem:[%s220 + $0x8] sm:$0xf]
        %v263 = vld [vmem:[%s220 + $0xc] sm:$0xf]
        %v264 = vld [vmem:[%s254] sm:$0x1]
        %v266 = vlaneseq
        %v267 = vshrl.u32 %v266, 7
        %v268 = vsub.s32 0, %v267
        %v269 = vrot.slane %v264, %v268
        %v275 = vunpack.c.l.b16 %v260
        %v276 = vunpack.c.l.b16 %v261
        %v277 = vunpack.c.l.b16 %v262
        %v278 = vunpack.c.l.b16 %v263
        %v279 = vpack.c.b16 %v276, %v275
        %v280 = vpack.c.b16 %v278, %v277
        %vm283 = vcmask 261120
        %v285 = vsel %vm283, %v259, 0
        %287 = vmatprep.subr.bf16.mxu0 0
        %288 = vmatpush1.bf16.msra.mxu0 %v279
        %289 = vmatprep.subr.bf16.mxu0 0
        %290 = vmatpush1.bf16.msra.mxu0 %v280
        %291 = vmatprep.subr.bf16.mxu0 0
        %292 = vmatpush1.bf16.msra.mxu0 0
        %293 = vmatprep.subr.bf16.mxu0 0
        %294 = vmatpush1.bf16.msra.mxu0 0
        %295 = vmatprep.subr.bf16.mxu0 0
        %296 = vmatpush1.bf16.msra.mxu0 0
        %297 = vmatprep.subr.bf16.mxu0 0
        %298 = vmatpush1.bf16.msra.mxu0 0
        %299 = vmatprep.subr.bf16.mxu0 0
        %300 = vmatpush1.bf16.msra.mxu0 0
        %301 = vmatprep.subr.bf16.mxu0 0
        %302 = vmatpush1.bf16.msra.mxu0 0
        %303 = vmatprep.subr.bf16.mxu0 0
        %304 = vmatpush1.bf16.msra.mxu0 0
        %305 = vmatprep.subr.bf16.mxu0 0
        %306 = vmatpush1.bf16.msra.mxu0 0
        %307 = vmatprep.subr.bf16.mxu0 0
        %308 = vmatpush1.bf16.msra.mxu0 0
        %309 = vmatprep.subr.bf16.mxu0 0
        %310 = vmatpush1.bf16.msra.mxu0 0
        %311 = vmatprep.subr.bf16.mxu0 0
        %312 = vmatpush1.bf16.msra.mxu0 0
        %313 = vmatprep.subr.bf16.mxu0 0
        %314 = vmatpush1.bf16.msra.mxu0 0
        %315 = vmatprep.subr.bf16.mxu0 0
        %316 = vmatpush1.bf16.msra.mxu0 0
        %317 = vmatprep.subr.bf16.mxu0 0
        %318 = vmatpush1.bf16.msra.mxu0 0
        %319 = vmatprep.mubr.bf16.mxu0 0
        %320 = vmatmul.mubr.bf16.gmra.mrb[0].mxu0 %v285
        %v321 = vpop.f32.mrb[0].mxu0
        %v322 = vadd.f32 %v269, %v321
        %v323 = vpop.f32.mrb[0].mxu0
        %v324 = vpop.f32.mrb[0].mxu0
        %v325 = vadd.f32 %v269, %v324
        %v326 = vpop.f32.mrb[0].mxu0
        %327 = vdwg.mxu0
        %s328 = smul.u32 %s28, 128
        %s329 = sshra.s32 %s328, 7
        %s330 = sand.u32 %s328, 127
        %s331 = smul.addr %s329, 8
        %s332 = scalar_lea.vmem [#allocation2], %s331
        %333 = vst [vmem:[%s332] sm:$0xff] %v322
        %334 = vst [vmem:[%s332 + $0x10] sm:$0xff] %v325
        %p335 = scmp.eq.s32.totalorder %s28, 1
        // Predicated region
        $region41: #{tpu_custom_call.1} parent=31 // pred_check
          %p336 = pneg %p335
        $region42: #{tpu_custom_call.1} parent=31 // pred_check_branch
          %338 = sbr.rel (%p336) target = $region44
        $region43: #{tpu_custom_call.1} parent=31 // pred_region
          %v339 = vld [vmem:[#allocation2] sm:$0xff]
          %v340 = vld [vmem:[#allocation2 + $0x8] sm:$0xff]
          %v341 = vld [vmem:[#allocation2 + $0x10] sm:$0xff]
          %v342 = vld [vmem:[#allocation2 + $0x18] sm:$0xff]
          %v343 = vmax.f32 %v339, %v340
          %344 = vmax.xlane.f32.xlu0 %v343
          %v345 = vpop.xlane.xlu0 %344
          %v346 = vmax.f32 %v341, %v342
          %347 = vmax.xlane.f32.xlu0 %v346
          %v348 = vpop.xlane.xlu0 %347
          %v349 = vsub.f32 %v339, %v345
          %v350 = vsub.f32 %v340, %v345
          %v351 = vsub.f32 %v341, %v348
          %v352 = vsub.f32 %v342, %v348
          %v353 = vmul.f32 %v349, 1.442695
          %v354 = vpow.pop %v353
          %v355 = vmul.f32 %v350, 1.442695
          %v356 = vpow.pop %v355
          %v357 = vmul.f32 %v351, 1.442695
          %v358 = vpow.pop %v357
          %v359 = vmul.f32 %v352, 1.442695
          %v360 = vpow.pop %v359
          %v361 = vadd.f32 %v354, %v356
          %362 = vadd.xlane.f32.xlu0 %v361
          %v363 = vpop.xlane.xlu0 %362
          %v364 = vadd.f32 %v358, %v360
          %365 = vadd.xlane.f32.xlu0 %v364
          %v366 = vpop.xlane.xlu0 %365
          %v367 = vlog2.pop %v363
          %v368 = vmul.f32 %v367, 0.6931472
          %v369 = vlog2.pop %v366
          %v370 = vmul.f32 %v369, 0.6931472
          %v371 = vsub.f32 %v349, %v368
          %v372 = vsub.f32 %v350, %v368
          %v373 = vsub.f32 %v351, %v370
          %v374 = vsub.f32 %v352, %v370
          %375 = vst [vmem:[%s250] sm:$0xff] %v371
          %376 = vst [vmem:[%s250 + $0x8] sm:$0xff] %v372
          %377 = vst [vmem:[%s250 + $0x10] sm:$0xff] %v373
          %378 = vst [vmem:[%s250 + $0x18] sm:$0xff] %v374
        $region44: #{tpu_custom_call.1} parent=31 // pred_fallthru
          _
        %s379 = sand.u32 %s121, 1
        %s380 = scalar_lea.sflag [#allocation5], %s379
        %s381 = sand.u32 %s121, 1
        %s382 = smul.addr %s381, 32
        %s383 = scalar_lea.vmem [#allocation8], %s382
        // Predicated region
        $region45: #{tpu_custom_call.1} parent=31 // pred_check
          %p384 = pneg %p131
        $region46: #{tpu_custom_call.1} parent=31 // pred_check_branch
          %386 = sbr.rel (%p384) target = $region48
        $region47: #{tpu_custom_call.1} parent=31 // pred_region
          %s387 = smul.u32 2, %s27
          %s389 = ssub.s32 512, 512
          %390 = vsyncadd %s380, %s389
          %s391 = smul.addr %s387, 2
          %s392 = smul.addr %s391, 128
          %s393 = scalar_lea.hbm %s3, %s392
          %s394 = sshll.u32 %s383, 4
          %s395 = int_to_ptr.vmem [resolvable:$true] %s394
          %400 = dma.vmem_to_hbm [thread:$0]  %s395, 512, %s393, %s380, 256, 256, 16
        $region48: #{tpu_custom_call.1} parent=31 // pred_fallthru
          _
      $region32: #{tpu_custom_call.1} parent=5 // pred_fallthru
        _
      %p401 = scmp.le.s32.totalorder 2, %s18
      // Predicated region
      $region49: #{tpu_custom_call.1} parent=5 // pred_check
        %p402 = pneg %p401
      $region50: #{tpu_custom_call.1} parent=5 // pred_check_branch
        %404 = sbr.rel (%p402) target = $region52
      $region51: #{tpu_custom_call.1} parent=5 // pred_region
        %s405 = ssub.s32 %s18, 2
        // Predicated region
        $region53: #{tpu_custom_call.1} parent=51 // pred_check
          %p406 = pneg %p137
        $region54: #{tpu_custom_call.1} parent=51 // pred_check_branch
          %408 = sbr.rel (%p406) target = $region56
        $region55: #{tpu_custom_call.1} parent=51 // pred_region
          %s409 = sand.u32 %s122, 1
          %s410 = scalar_lea.sflag [#allocation5], %s409
          %s411 = sand.u32 %s122, 1
          %s412 = smul.addr %s411, 32
          %s413 = scalar_lea.vmem [#allocation8], %s412
          %414 = dma.done %s410, 512
        $region56: #{tpu_custom_call.1} parent=51 // pred_fallthru
          _
      $region52: #{tpu_custom_call.1} parent=5 // pred_fallthru
        _
    $region6: #{tpu_custom_call.1} parent=1 // loop_footer
      %s22 = sadd.s32 1, %s18
    $region7: #{tpu_custom_call.1} parent=1 // loop_footer_branch
      %17 = sbr.rel target = $region3
    $region8: #{tpu_custom_call.1} parent=1 // loop_exit
      _
    %415 = vsyncpa [#allocation4], 1
    %s416 = scalar_lea.sflag [#allocation4], 1
    %417 = vsyncpa %s416, 1
    %418 = vsyncpa [#allocation7], 1
    %s419 = scalar_lea.sflag [#allocation7], 1
    %420 = vsyncpa %s419, 1
    %421 = vsyncpa [#allocation5], 1
    %s422 = scalar_lea.sflag [#allocation5], 1
    %423 = vsyncpa %s422, 1

</llo_original>
